<compile_context>
chip_gen: v7x
topology: tpu7x:2x2x1
jax: 0.10.0
libtpu: 0.0.40
codegen_flags: <defaults>
</compile_context>

<pallas_src>
import functools

import jax
import jax.numpy as jnp
from jax.experimental import pallas as pl
from jax.experimental.pallas import tpu as pltpu


def _round_up(a, b):
    return (a + b - 1) // b * b


def _linear_kernel(x_ref, w_ref, b_ref, o_ref):
    # x_ref: (TM, in_ch) VMEM tile (pipelined)
    # w_ref: (1, in_ch)  VMEM, resident across the whole grid
    # b_ref: (1, 1)      SMEM scalar
    # o_ref: (1, 1, TM)  VMEM, lane-dense output block
    prod = x_ref[...] * w_ref[...]                  # VPU broadcast multiply
    rowsum = jnp.sum(prod, axis=-1)                 # lane reduction -> (TM,)
    out = rowsum + b_ref[0, 0]                      # scalar bias from SMEM
    o_ref[...] = out.reshape(o_ref.shape).astype(o_ref.dtype)


@functools.partial(jax.jit, static_argnames=("tm",))
def linear_model(x, weight, bias, *, tm=8192):
    """x: [N, in_ch] f32, weight: [in_ch, 1] f32, bias: [1] f32 -> [N, 1] f32."""
    n, in_ch = x.shape
    # Shrink the row tile for small inputs; keep it a multiple of 8 (sublanes).
    tm = max(8, min(tm, _round_up(n, 8)))
    n_pad = _round_up(n, tm)
    if n_pad != n:
        x = jnp.pad(x, ((0, n_pad - n), (0, 0)))
    num_tiles = n_pad // tm

    w_row = weight.reshape(1, in_ch).astype(x.dtype)   # weight as a lane-dense row
    b_scalar = bias.reshape(1, 1).astype(x.dtype)      # scalar, lives in SMEM

    out = pl.pallas_call(
        _linear_kernel,
        out_shape=jax.ShapeDtypeStruct((num_tiles, 1, tm), x.dtype),
        grid_spec=pltpu.PrefetchScalarGridSpec(
            num_scalar_prefetch=0,
            grid=(num_tiles,),
            in_specs=[
                pl.BlockSpec((tm, in_ch), lambda i: (i, 0)),        # x tile
                pl.BlockSpec((1, in_ch), lambda i: (0, 0)),         # weight (resident)
                pl.BlockSpec(memory_space=pltpu.MemorySpace.SMEM),  # bias scalar
            ],
            out_specs=pl.BlockSpec((1, 1, tm), lambda i: (i, 0, 0)),
        ),
        compiler_params=pltpu.CompilerParams(
            dimension_semantics=("parallel",),
        ),
    )(x, w_row, b_scalar)

    # (num_tiles, 1, TM) slab -> (N, 1) column vector (drop row padding).
    return out.reshape(n_pad, 1)[:n]


if __name__ == "__main__":
    key = jax.random.PRNGKey(0)
    kx, kw, kb, kx2 = jax.random.split(key, 4)

    IN_CH = 32
    weight = jax.random.normal(kw, (IN_CH, 1), dtype=jnp.float32)  # torch.randn(in_ch, 1)
    bias = jax.random.normal(kb, (1,), dtype=jnp.float32)          # torch.randn(1)

    # Small-shape check consistent with the module's forward (x.mm(weight) + bias).
    N = 8
    x = jax.random.normal(kx, (N, IN_CH), dtype=jnp.float32)
    out = jax.block_until_ready(linear_model(x, weight, bias))
    ref = x @ weight + bias
    assert out.shape == (N, 1)
    assert jnp.allclose(out, ref, atol=1e-4, rtol=1e-5), "mismatch vs reference (small)"

    # Multi-tile check: exercises row tiling, padding, and the lane-dense output path.
    N2 = 300
    x2 = jax.random.normal(kx2, (N2, IN_CH), dtype=jnp.float32)
    out2 = jax.block_until_ready(linear_model(x2, weight, bias, tm=128))
    ref2 = x2 @ weight + bias
    assert out2.shape == (N2, 1)
    assert jnp.allclose(out2, ref2, atol=1e-4, rtol=1e-5), "mismatch vs reference (tiled)"

    print("KERNEL_OK")
</pallas_src>

<mosaic_0001>
module attributes {stable_mosaic.version = 11 : i64} {
  func.func @_linear_kernel(%arg0: i32, %arg1: memref<8x32xf32, #tpu.memory_space<vmem>>, %arg2: memref<1x32xf32, #tpu.memory_space<vmem>>, %arg3: memref<1x1xf32, #tpu.memory_space<smem>>, %arg4: memref<1x1x8xf32, #tpu.memory_space<vmem>>) attributes {dimension_semantics = [#tpu.dimension_semantics<parallel>], iteration_bounds = array<i64: 1>, scalar_prefetch = 0 : i64, scratch_operands = 0 : i64, tpu.core_type = #tpu.core_type<tc>, window_params = [{transform_indices = @transform_0, window_bounds = array<i64: 8, 32>}, {pipeline_mode = #tpu.pipeline_mode<synchronous>, transform_indices = @transform_1, window_bounds = array<i64: 1, 32>}, {transform_indices = @transform_2, window_bounds = array<i64: 1, 1>}, {transform_indices = @transform_3, window_bounds = array<i64: 1, 1, 8>}]} {
    %c0 = arith.constant 0 : index
    %c0_0 = arith.constant 0 : index
    %0 = vector.load %arg1[%c0, %c0_0] : memref<8x32xf32, #tpu.memory_space<vmem>>, vector<8x32xf32>
    %c0_1 = arith.constant 0 : index
    %c0_2 = arith.constant 0 : index
    %1 = vector.load %arg2[%c0_1, %c0_2] : memref<1x32xf32, #tpu.memory_space<vmem>>, vector<1x32xf32>
    %2 = vector.broadcast %1 : vector<1x32xf32> to vector<8x32xf32>
    %3 = arith.mulf %0, %2 : vector<8x32xf32>
    %cst = arith.constant dense<0.000000e+00> : vector<8xf32>
    %4 = vector.multi_reduction <add>, %3, %cst [1] : vector<8x32xf32> to vector<8xf32>
    %c0_3 = arith.constant 0 : index
    %c0_4 = arith.constant 0 : index
    %5 = memref.load %arg3[%c0_3, %c0_4] : memref<1x1xf32, #tpu.memory_space<smem>>
    %6 = vector.broadcast %5 : f32 to vector<8xf32>
    %7 = arith.addf %4, %6 : vector<8xf32>
    %8 = vector.shape_cast %7 : vector<8xf32> to vector<1x1x8xf32>
    %c0_5 = arith.constant 0 : index
    %c0_6 = arith.constant 0 : index
    %c0_7 = arith.constant 0 : index
    %9 = vector.load %arg4[%c0_5, %c0_6, %c0_7] : memref<1x1x8xf32, #tpu.memory_space<vmem>>, vector<1x1x8xf32>
    tpu.vector_store %arg4[%c0_5, %c0_6, %c0_7], %8 {strides = array<i32>} : memref<1x1x8xf32, #tpu.memory_space<vmem>>, vector<1x1x8xf32>,
    return
  }
  func.func @transform_0(%arg0: i32) -> (i32, i32) {
    %c0_i32 = arith.constant 0 : i32
    %c0_i32_0 = arith.constant 0 : i32
    return %arg0, %c0_i32 : i32, i32
  }
  func.func @transform_1(%arg0: i32) -> (i32, i32) {
    %c0_i32 = arith.constant 0 : i32
    %c0_i32_0 = arith.constant 0 : i32
    %c0_i32_1 = arith.constant 0 : i32
    return %c0_i32, %c0_i32_0 : i32, i32
  }
  func.func @transform_2(%arg0: i32) -> (i32, i32) {
    %c0_i32 = arith.constant 0 : i32
    %c0_i32_0 = arith.constant 0 : i32
    %c0_i32_1 = arith.constant 0 : i32
    return %c0_i32, %c0_i32_0 : i32, i32
  }
  func.func @transform_3(%arg0: i32) -> (i32, i32, i32) {
    %c0_i32 = arith.constant 0 : i32
    %c0_i32_0 = arith.constant 0 : i32
    %c0_i32_1 = arith.constant 0 : i32
    return %arg0, %c0_i32, %c0_i32_0 : i32, i32, i32
  }
}

</mosaic_0001>

<llo_original>
// kernel: linear_model.1
$region0: #{linear_model.1}
  #allocation0 [shape = 'u32[]', space=smem, size = 0x4, offset = 0x4, fixed_abs, tag = 'smem constant byte address 0x4 - core index']
  #allocation1 [shape = 'u32[144,128]{1,0:T(1,128)}', space=vmem, size = 0x12000, scoped, tag = 'internal scratch']
  #allocation2 [shape = 'f32[1,1]{1,0:T(1,128)S(6)}', space=smem, size = 0x200, scoped, tag = 'scoped memory for linear_model.1']
  %s0 = inlined_call_operand.vmem [shape: f32[8,32], index: 0, kind: input, shape index: {}]
  %s1 = inlined_call_operand.vmem [shape: f32[1,32], index: 1, kind: input, shape index: {}]
  %s2 = inlined_call_operand.<no memory space> [shape: f32[1,1], index: 2, kind: input, shape index: {}]
  %s3 = inlined_call_operand.hbm [shape: f32[1,1,8], index: 3, kind: output, shape index: {}]
  %s4 = sld [smem:[#allocation0]]
  $region22: #{linear_model.1} parent=0
    _
  %s6 = ssub.s32 1, %s4
  %s7 = scalar_select 0, %s6, %s4
  %8 = sst [smem:[#allocation2]] %s2
  $region1: #{linear_model.1} parent=0
    #allocation3 [shape = 'u8[512]{0}', space=vmem, size = 0x400, scoped, tag = 'output window, operand 0, single buffered']
    #allocation4 [shape = 's32[1]{0}', space=sflag, size = 0x4, scoped, tag = 'scoped memory for linear_model.1']
    %9 = vsyncpa [#allocation4], 0
    // Predicated region
    $region2: #{linear_model.1} parent=1 // pred_check
      _
    $region3: #{linear_model.1} parent=1 // pred_check_branch
      %11 = sbr.rel (0) target = $region5
    $region4: #{linear_model.1} parent=1 // pred_region
      _
    $region5: #{linear_model.1} parent=1 // pred_fallthru
      _
    // Predicated region
    $region6: #{linear_model.1} parent=1 // pred_check
      _
    $region7: #{linear_model.1} parent=1 // pred_check_branch
      %13 = sbr.rel (0) target = $region9
    $region8: #{linear_model.1} parent=1 // pred_region
      _
    $region9: #{linear_model.1} parent=1 // pred_fallthru
      _
    // Predicated region
    $region10: #{linear_model.1} parent=1 // pred_check
      _
    $region11: #{linear_model.1} parent=1 // pred_check_branch
      %15 = sbr.rel (0) target = $region13
    $region12: #{linear_model.1} parent=1 // pred_region
      _
    $region13: #{linear_model.1} parent=1 // pred_fallthru
      _
    %v16 = vld [vmem:[%s0] sm:$0xff]
    %v17 = vld [vmem:[%s1] sm:$0x1]
    %v19 = vlaneseq
    %v20 = vshrl.u32 %v19, 7
    %v21 = vsub.s32 0, %v20
    %v22 = vrot.slane %v17, %v21
    %v24 = vmul.f32 %v16, %v22
    %vm25 = vcmask 261120
    %v26 = vsel %vm25, %v24, 0.0
    %27 = vadd.xlane.f32.xlu0 %v26
    %v28 = vpop.xlane.xlu0 %27
    %s29 = sld [smem:[#allocation2]]
    %v30 = vstv %s29
    %v31 = vadd.f32 %v28, %v30
    %v33 = vlaneseq
    %v34 = vand.u32 %v33, 127
    %v35 = vlaneseq
    %v36 = vshrl.u32 %v35, 7
    %v37 = vsub.s32 %v34, %v36
    %v38 = vrot.slane %v31, %v37
    %vm40 = vcmask 57344
    %41 = vst.msk [vmem:[#allocation3] sm:$0x1] %vm40, %v38
    // Predicated region
    $region14: #{linear_model.1} parent=1 // pred_check
      _
    $region15: #{linear_model.1} parent=1 // pred_check_branch
      %43 = sbr.rel (0) target = $region17
    $region16: #{linear_model.1} parent=1 // pred_region
      %s45 = ssub.s32 16, 16
      %46 = vsyncadd [#allocation4], %s45
      %s48 = sshll.u32 [#allocation3], 4
      %s49 = int_to_ptr.vmem [resolvable:$true] %s48
      %51 = dma.vmem_to_hbm [thread:$0]  %s49, 16, %s3, [#allocation4]
    $region17: #{linear_model.1} parent=1 // pred_fallthru
      _
    // Predicated region
    $region18: #{linear_model.1} parent=1 // pred_check
      _
    $region19: #{linear_model.1} parent=1 // pred_check_branch
      %53 = sbr.rel (0) target = $region21
    $region20: #{linear_model.1} parent=1 // pred_region
      %54 = dma.done [#allocation4], 16
    $region21: #{linear_model.1} parent=1 // pred_fallthru
      _
    %55 = vsyncpa [#allocation4], 1

</llo_original>
